<compile_context>
chip_gen: v5e
topology: v5e:2x2
jax: 0.10.0
libtpu: 0.0.40
codegen_flags: <defaults>
</compile_context>

<pallas_src>
import jax
import jax.numpy as jnp
from jax.experimental import pallas as pl
from jax.experimental.pallas import tpu as pltpu

HIDDEN = 128
LANE = 128  # TPU lane width; MXU operand (w3) padded to a multiple of this.


def _round_up(n, m):
    return ((n + m - 1) // m) * m


def dqn_kernel(x_ref, w1_ref, b1_ref, w2_ref, b2_ref, w3_ref, b3_ref, o_ref):
    a_out = o_ref.shape[-1]  # real action_size (static)
    # Cast x to bf16 in-kernel (avoids a separate XLA cast pre-pass over HBM).
    xb = x_ref[...].astype(jnp.bfloat16)
    # fc1 + relu  (bf16 operands -> f32 MXU accumulation; bias/ReLU in f32)
    h1 = jnp.dot(xb, w1_ref[...], preferred_element_type=jnp.float32)
    h1 = jnp.maximum(h1 + b1_ref[...], 0.0).astype(jnp.bfloat16)
    # fc2 + relu
    h2 = jnp.dot(h1, w2_ref[...], preferred_element_type=jnp.float32)
    h2 = jnp.maximum(h2 + b2_ref[...], 0.0).astype(jnp.bfloat16)
    # fc3 (no activation); w3 is lane-padded for the MXU, store only real columns.
    out = jnp.dot(h2, w3_ref[...], preferred_element_type=jnp.float32)
    o_ref[...] = (out[:, :a_out] + b3_ref[...]).astype(o_ref.dtype)


def init_params(key, state_size, action_size, hidden=HIDDEN):
    """Deterministic init mirroring nn.Linear shapes (stored transposed: (in, out))."""
    ks = jax.random.split(key, 6)

    def linear(kw, kb, fan_in, fan_out):
        bound = 1.0 / jnp.sqrt(fan_in)
        w = jax.random.uniform(kw, (fan_in, fan_out), jnp.float32, -bound, bound)
        b = jax.random.uniform(kb, (1, fan_out), jnp.float32, -bound, bound)
        return w, b

    w1, b1 = linear(ks[0], ks[1], state_size, hidden)
    w2, b2 = linear(ks[2], ks[3], hidden, hidden)
    w3, b3 = linear(ks[4], ks[5], hidden, action_size)
    return {"w1": w1, "b1": b1, "w2": w2, "b2": b2, "w3": w3, "b3": b3}


def prepare_params(params):
    """One-time cast/pad of the weights into kernel-ready form (hoisted out of the
    per-call path): bf16 weights, w3 lane-padded to a multiple of 128, f32 biases."""
    w1, b1, w2, b2, w3, b3 = (params[k] for k in ("w1", "b1", "w2", "b2", "w3", "b3"))
    state_size = w1.shape[0]
    action_size = w3.shape[1]
    a_pad = _round_up(max(action_size, LANE), LANE)
    w3p = jnp.zeros((HIDDEN, a_pad), jnp.float32).at[:, :action_size].set(w3)
    return {
        "state_size": state_size,
        "action_size": action_size,
        "a_pad": a_pad,
        "w1": w1.astype(jnp.bfloat16),
        "b1": b1.astype(jnp.float32).reshape(1, HIDDEN),
        "w2": w2.astype(jnp.bfloat16),
        "b2": b2.astype(jnp.float32).reshape(1, HIDDEN),
        "w3": w3p.astype(jnp.bfloat16),
        "b3": b3.astype(jnp.float32).reshape(1, action_size),
    }


def dqn_forward(x, prepared, *, batch_tile=2048):
    """x: (B, state_size) float32. prepared: output of prepare_params()."""
    B, S = x.shape
    assert S == prepared["state_size"]
    A = prepared["action_size"]
    a_pad = prepared["a_pad"]

    # Batch tiling: big tiles amortize per-step overhead; for B <= batch_tile pick
    # ~half the batch (sublane-aligned) so there are >= 2 grid steps (v7x megacore).
    tb = batch_tile
    if B <= tb:
        tb = max(8, _round_up(-(-B // 2), 8))
    b_pad = _round_up(B, tb)
    if b_pad != B:
        x = jnp.pad(x, ((0, b_pad - B), (0, 0)))

    grid = (b_pad // tb,)
    flops = 2 * b_pad * (S * HIDDEN + HIDDEN * HIDDEN + HIDDEN * a_pad)
    w_bytes = (S * HIDDEN + HIDDEN * HIDDEN + HIDDEN * a_pad) * 2 + (2 * HIDDEN + A) * 4
    bytes_accessed = b_pad * S * 4 + w_bytes + b_pad * A * 4

    # Explicit scoped-VMEM budget (matters on v5e whose default is 16 MiB):
    # double-buffered x + double-buffered compact output + resident weights
    # + generous slack for the (tb, 128) f32 intermediates.
    vmem_limit = 2 * tb * S * 4 + 2 * tb * A * 4 + w_bytes + 8 * tb * HIDDEN * 4 + (4 << 20)
    vmem_limit = int(min(max(vmem_limit, 32 << 20), 56 << 20))

    out = pl.pallas_call(
        dqn_kernel,
        out_shape=jax.ShapeDtypeStruct((b_pad, A), jnp.float32),
        grid_spec=pltpu.PrefetchScalarGridSpec(
            num_scalar_prefetch=0,
            grid=grid,
            in_specs=[
                pl.BlockSpec((tb, S), lambda i: (i, 0)),           # x tile (pipelined)
                pl.BlockSpec((S, HIDDEN), lambda i: (0, 0)),       # w1 (resident)
                pl.BlockSpec((1, HIDDEN), lambda i: (0, 0)),       # b1 (resident)
                pl.BlockSpec((HIDDEN, HIDDEN), lambda i: (0, 0)),  # w2 (resident)
                pl.BlockSpec((1, HIDDEN), lambda i: (0, 0)),       # b2 (resident)
                pl.BlockSpec((HIDDEN, a_pad), lambda i: (0, 0)),   # w3 padded (resident)
                pl.BlockSpec((1, A), lambda i: (0, 0)),            # b3 compact (resident)
            ],
            out_specs=pl.BlockSpec((tb, A), lambda i: (i, 0)),     # compact output
        ),
        compiler_params=pltpu.CompilerParams(
            dimension_semantics=("parallel",),
            vmem_limit_bytes=vmem_limit,
        ),
        cost_estimate=pl.CostEstimate(
            flops=flops, transcendentals=0, bytes_accessed=bytes_accessed
        ),
    )(
        x,
        prepared["w1"], prepared["b1"],
        prepared["w2"], prepared["b2"],
        prepared["w3"], prepared["b3"],
    )

    return out[:B]


def dqn_reference_f32(x, p):
    h1 = jnp.maximum(x @ p["w1"] + p["b1"], 0.0)
    h2 = jnp.maximum(h1 @ p["w2"] + p["b2"], 0.0)
    return h2 @ p["w3"] + p["b3"]


def dqn_reference_bf16(x, p):
    # Mirrors the kernel's mixed precision: bf16 operands, f32 MXU accumulation,
    # f32 bias add + ReLU, bf16 re-cast of intermediates.
    xb = x.astype(jnp.bfloat16)
    w1 = p["w1"].astype(jnp.bfloat16)
    w2 = p["w2"].astype(jnp.bfloat16)
    w3 = p["w3"].astype(jnp.bfloat16)
    h1 = jnp.maximum(
        jnp.dot(xb, w1, preferred_element_type=jnp.float32) + p["b1"], 0.0
    ).astype(jnp.bfloat16)
    h2 = jnp.maximum(
        jnp.dot(h1, w2, preferred_element_type=jnp.float32) + p["b2"], 0.0
    ).astype(jnp.bfloat16)
    return jnp.dot(h2, w3, preferred_element_type=jnp.float32) + p["b3"]


if __name__ == "__main__":
    key = jax.random.PRNGKey(0)
    k_x, k_p = jax.random.split(key)

    batch = 2
    state_size = 8
    action_size = 4

    x = jax.random.normal(k_x, (batch, state_size), jnp.float32)
    params = init_params(k_p, state_size, action_size)
    prepared = prepare_params(params)  # one-time cast/pad, reused across calls

    out = jax.block_until_ready(dqn_forward(x, prepared))
    ref_mixed = dqn_reference_bf16(x, params)
    ref_f32 = dqn_reference_f32(x, params)

    assert out.shape == (batch, action_size), out.shape
    # Check against a reference with identical bf16/f32 mixed precision.
    assert jnp.allclose(out, ref_mixed, atol=1e-3, rtol=1e-3), (out, ref_mixed)
    # Sanity check against the full-f32 reference (bf16 operand rounding only).
    assert jnp.allclose(out, ref_f32, atol=5e-2, rtol=5e-2), (out, ref_f32)
    print("KERNEL_OK")
</pallas_src>

<mosaic_0001>
module attributes {stable_mosaic.version = 11 : i64} {
  func.func @dqn_kernel(%arg0: i32, %arg1: memref<8x8xf32, #tpu.memory_space<vmem>>, %arg2: memref<8x128xbf16, #tpu.memory_space<vmem>>, %arg3: memref<1x128xf32, #tpu.memory_space<vmem>>, %arg4: memref<128x128xbf16, #tpu.memory_space<vmem>>, %arg5: memref<1x128xf32, #tpu.memory_space<vmem>>, %arg6: memref<128x128xbf16, #tpu.memory_space<vmem>>, %arg7: memref<1x4xf32, #tpu.memory_space<vmem>>, %arg8: memref<8x4xf32, #tpu.memory_space<vmem>>) attributes {dimension_semantics = [#tpu.dimension_semantics<parallel>], iteration_bounds = array<i64: 1>, scalar_prefetch = 0 : i64, scratch_operands = 0 : i64, tpu.core_type = #tpu.core_type<tc>, window_params = [{transform_indices = @transform_0, window_bounds = array<i64: 8, 8>}, {pipeline_mode = #tpu.pipeline_mode<synchronous>, transform_indices = @transform_1, window_bounds = array<i64: 8, 128>}, {pipeline_mode = #tpu.pipeline_mode<synchronous>, transform_indices = @transform_2, window_bounds = array<i64: 1, 128>}, {pipeline_mode = #tpu.pipeline_mode<synchronous>, transform_indices = @transform_3, window_bounds = array<i64: 128, 128>}, {pipeline_mode = #tpu.pipeline_mode<synchronous>, transform_indices = @transform_4, window_bounds = array<i64: 1, 128>}, {pipeline_mode = #tpu.pipeline_mode<synchronous>, transform_indices = @transform_5, window_bounds = array<i64: 128, 128>}, {pipeline_mode = #tpu.pipeline_mode<synchronous>, transform_indices = @transform_6, window_bounds = array<i64: 1, 4>}, {transform_indices = @transform_7, window_bounds = array<i64: 8, 4>}]} {
    %c0 = arith.constant 0 : index
    %c0_0 = arith.constant 0 : index
    %0 = vector.load %arg1[%c0, %c0_0] : memref<8x8xf32, #tpu.memory_space<vmem>>, vector<8x8xf32>
    %1 = arith.truncf %0 : vector<8x8xf32> to vector<8x8xbf16>
    %c0_1 = arith.constant 0 : index
    %c0_2 = arith.constant 0 : index
    %2 = vector.load %arg2[%c0_1, %c0_2] : memref<8x128xbf16, #tpu.memory_space<vmem>>, vector<8x128xbf16>
    %cst = arith.constant dense<0.000000e+00> : vector<8x128xf32>
    %3 = tpu.matmul %1, %2, %cst {dimension_numbers = #tpu.dot_dimension_numbers<[1], [0], [0], [1], [0, 0, 1, 1], [], []>} : vector<8x8xbf16>, vector<8x128xbf16>, vector<8x128xf32> -> vector<8x128xf32>
    %c0_3 = arith.constant 0 : index
    %c0_4 = arith.constant 0 : index
    %4 = vector.load %arg3[%c0_3, %c0_4] : memref<1x128xf32, #tpu.memory_space<vmem>>, vector<1x128xf32>
    %5 = vector.broadcast %4 : vector<1x128xf32> to vector<8x128xf32>
    %6 = arith.addf %3, %5 : vector<8x128xf32>
    %cst_5 = arith.constant 0.000000e+00 : f32
    %7 = vector.broadcast %cst_5 : f32 to vector<8x128xf32>
    %8 = arith.maximumf %6, %7 : vector<8x128xf32>
    %9 = arith.truncf %8 : vector<8x128xf32> to vector<8x128xbf16>
    %c0_6 = arith.constant 0 : index
    %c0_7 = arith.constant 0 : index
    %10 = vector.load %arg4[%c0_6, %c0_7] : memref<128x128xbf16, #tpu.memory_space<vmem>>, vector<128x128xbf16>
    %cst_8 = arith.constant dense<0.000000e+00> : vector<8x128xf32>
    %11 = tpu.matmul %9, %10, %cst_8 {dimension_numbers = #tpu.dot_dimension_numbers<[1], [0], [0], [1], [0, 0, 1, 1], [], []>} : vector<8x128xbf16>, vector<128x128xbf16>, vector<8x128xf32> -> vector<8x128xf32>
    %c0_9 = arith.constant 0 : index
    %c0_10 = arith.constant 0 : index
    %12 = vector.load %arg5[%c0_9, %c0_10] : memref<1x128xf32, #tpu.memory_space<vmem>>, vector<1x128xf32>
    %13 = vector.broadcast %12 : vector<1x128xf32> to vector<8x128xf32>
    %14 = arith.addf %11, %13 : vector<8x128xf32>
    %cst_11 = arith.constant 0.000000e+00 : f32
    %15 = vector.broadcast %cst_11 : f32 to vector<8x128xf32>
    %16 = arith.maximumf %14, %15 : vector<8x128xf32>
    %17 = arith.truncf %16 : vector<8x128xf32> to vector<8x128xbf16>
    %c0_12 = arith.constant 0 : index
    %c0_13 = arith.constant 0 : index
    %18 = vector.load %arg6[%c0_12, %c0_13] : memref<128x128xbf16, #tpu.memory_space<vmem>>, vector<128x128xbf16>
    %cst_14 = arith.constant dense<0.000000e+00> : vector<8x128xf32>
    %19 = tpu.matmul %17, %18, %cst_14 {dimension_numbers = #tpu.dot_dimension_numbers<[1], [0], [0], [1], [0, 0, 1, 1], [], []>} : vector<8x128xbf16>, vector<128x128xbf16>, vector<8x128xf32> -> vector<8x128xf32>
    %20 = vector.extract_strided_slice %19 {offsets = [0, 0], sizes = [8, 4], strides = [1, 1]} : vector<8x128xf32> to vector<8x4xf32>
    %c0_15 = arith.constant 0 : index
    %c0_16 = arith.constant 0 : index
    %21 = vector.load %arg7[%c0_15, %c0_16] : memref<1x4xf32, #tpu.memory_space<vmem>>, vector<1x4xf32>
    %22 = vector.broadcast %21 : vector<1x4xf32> to vector<8x4xf32>
    %23 = arith.addf %20, %22 : vector<8x4xf32>
    %c0_17 = arith.constant 0 : index
    %c0_18 = arith.constant 0 : index
    %24 = vector.load %arg8[%c0_17, %c0_18] : memref<8x4xf32, #tpu.memory_space<vmem>>, vector<8x4xf32>
    tpu.vector_store %arg8[%c0_17, %c0_18], %23 {strides = array<i32>} : memref<8x4xf32, #tpu.memory_space<vmem>>, vector<8x4xf32>,
    return
  }
  func.func @transform_0(%arg0: i32) -> (i32, i32) {
    %c0_i32 = arith.constant 0 : i32
    %c0_i32_0 = arith.constant 0 : i32
    return %arg0, %c0_i32 : i32, i32
  }
  func.func @transform_1(%arg0: i32) -> (i32, i32) {
    %c0_i32 = arith.constant 0 : i32
    %c0_i32_0 = arith.constant 0 : i32
    %c0_i32_1 = arith.constant 0 : i32
    return %c0_i32, %c0_i32_0 : i32, i32
  }
  func.func @transform_2(%arg0: i32) -> (i32, i32) {
    %c0_i32 = arith.constant 0 : i32
    %c0_i32_0 = arith.constant 0 : i32
    %c0_i32_1 = arith.constant 0 : i32
    return %c0_i32, %c0_i32_0 : i32, i32
  }
  func.func @transform_3(%arg0: i32) -> (i32, i32) {
    %c0_i32 = arith.constant 0 : i32
    %c0_i32_0 = arith.constant 0 : i32
    %c0_i32_1 = arith.constant 0 : i32
    return %c0_i32, %c0_i32_0 : i32, i32
  }
  func.func @transform_4(%arg0: i32) -> (i32, i32) {
    %c0_i32 = arith.constant 0 : i32
    %c0_i32_0 = arith.constant 0 : i32
    %c0_i32_1 = arith.constant 0 : i32
    return %c0_i32, %c0_i32_0 : i32, i32
  }
  func.func @transform_5(%arg0: i32) -> (i32, i32) {
    %c0_i32 = arith.constant 0 : i32
    %c0_i32_0 = arith.constant 0 : i32
    %c0_i32_1 = arith.constant 0 : i32
    return %c0_i32, %c0_i32_0 : i32, i32
  }
  func.func @transform_6(%arg0: i32) -> (i32, i32) {
    %c0_i32 = arith.constant 0 : i32
    %c0_i32_0 = arith.constant 0 : i32
    %c0_i32_1 = arith.constant 0 : i32
    return %c0_i32, %c0_i32_0 : i32, i32
  }
  func.func @transform_7(%arg0: i32) -> (i32, i32) {
    %c0_i32 = arith.constant 0 : i32
    %c0_i32_0 = arith.constant 0 : i32
    return %arg0, %c0_i32 : i32, i32
  }
}

</mosaic_0001>

<llo_original>
// kernel: tpu_custom_call.1
$region0: #{tpu_custom_call.1}
  #allocation0 [shape = 'u32[]', space=smem, size = 0x4, offset = 0x4, fixed_abs, tag = 'smem constant byte address 0x4 - core index']
  #allocation1 [shape = 'u32[72,128]{1,0:T(1,128)}', space=vmem, size = 0x9000, scoped, tag = 'internal scratch']
  %s0 = inlined_call_operand.hbm [shape: f32[8,8], index: 0, kind: input, shape index: {}]
  %s1 = inlined_call_operand.hbm [shape: bf16[8,128], index: 1, kind: input, shape index: {}]
  %s2 = inlined_call_operand.vmem [shape: f32[1,128], index: 2, kind: input, shape index: {}]
  %s3 = inlined_call_operand.hbm [shape: bf16[128,128], index: 3, kind: input, shape index: {}]
  %s4 = inlined_call_operand.vmem [shape: f32[1,128], index: 4, kind: input, shape index: {}]
  %s5 = inlined_call_operand.hbm [shape: bf16[128,128], index: 5, kind: input, shape index: {}]
  %s6 = inlined_call_operand.vmem [shape: f32[1,4], index: 6, kind: input, shape index: {}]
  %s7 = inlined_call_operand.vmem [shape: f32[8,4], index: 7, kind: output, shape index: {}]
  %s8 = sld [smem:[#allocation0]]
  $region54: #{tpu_custom_call.1} parent=0
    _
  %s10 = ssub.s32 1, %s8
  %s11 = scalar_select 0, %s10, %s8
  $region1: #{tpu_custom_call.1} parent=0
    #allocation2 [shape = 'u8[4096]{0}', space=vmem, size = 0x1000, scoped, tag = 'input window, operand 0, single buffered']
    #allocation3 [shape = 's32[1]{0}', space=sflag, size = 0x4, scoped, tag = 'scoped memory for tpu_custom_call.1']
    #allocation4 [shape = 'u8[2048]{0}', space=vmem, size = 0x800, scoped, tag = 'input window, operand 1, single buffered']
    #allocation5 [shape = 's32[1]{0}', space=sflag, size = 0x4, scoped, tag = 'scoped memory for tpu_custom_call.1']
    #allocation6 [shape = 'u8[32768]{0}', space=vmem, size = 0x8000, scoped, tag = 'input window, operand 3, single buffered']
    #allocation7 [shape = 'u8[32768]{0}', space=vmem, size = 0x8000, scoped, tag = 'input window, operand 5, single buffered']
    #allocation8 [shape = 's32[1]{0}', space=sflag, size = 0x4, scoped, tag = 'scoped memory for tpu_custom_call.1']
    %12 = vsyncpa [#allocation3], 0
    %13 = vsyncpa [#allocation5], 0
    %14 = vsyncpa [#allocation8], 0
    // Predicated region
    $region2: #{tpu_custom_call.1} parent=1 // pred_check
      _
    $region3: #{tpu_custom_call.1} parent=1 // pred_check_branch
      %16 = sbr.rel (0) target = $region5
    $region4: #{tpu_custom_call.1} parent=1 // pred_region
      %18 = vsyncadd [#allocation3], 0
      %s20 = sshll.u32 %s0, 4
      %s21 = int_to_ptr.hbm [resolvable:$true] %s20
      %s22 = sshll.u32 [#allocation2], 4
      %s23 = int_to_ptr.vmem [resolvable:$true] %s22
      %25 = dma.hbm_to_vmem [thread:$0]  %s21, 128, %s23, [#allocation3]
    $region5: #{tpu_custom_call.1} parent=1 // pred_fallthru
      _
    // Predicated region
    $region6: #{tpu_custom_call.1} parent=1 // pred_check
      _
    $region7: #{tpu_custom_call.1} parent=1 // pred_check_branch
      %27 = sbr.rel (0) target = $region9
    $region8: #{tpu_custom_call.1} parent=1 // pred_region
      %29 = vsyncadd [#allocation5], 0
      %s31 = sshll.u32 %s1, 4
      %s32 = int_to_ptr.hbm [resolvable:$true] %s31
      %s33 = sshll.u32 [#allocation4], 4
      %s34 = int_to_ptr.vmem [resolvable:$true] %s33
      %36 = dma.hbm_to_vmem [thread:$0]  %s32, 64, %s34, [#allocation5]
    $region9: #{tpu_custom_call.1} parent=1 // pred_fallthru
      _
    // Predicated region
    $region10: #{tpu_custom_call.1} parent=1 // pred_check
      _
    $region11: #{tpu_custom_call.1} parent=1 // pred_check_branch
      %38 = sbr.rel (0) target = $region13
    $region12: #{tpu_custom_call.1} parent=1 // pred_region
      _
    $region13: #{tpu_custom_call.1} parent=1 // pred_fallthru
      _
    // Predicated region
    $region14: #{tpu_custom_call.1} parent=1 // pred_check
      _
    $region15: #{tpu_custom_call.1} parent=1 // pred_check_branch
      %40 = sbr.rel (0) target = $region17
    $region16: #{tpu_custom_call.1} parent=1 // pred_region
      %42 = vsyncadd [#allocation5], 0
      %s43 = sshll.u32 %s3, 4
      %s44 = int_to_ptr.hbm [resolvable:$true] %s43
      %s45 = sshll.u32 [#allocation6], 4
      %s46 = int_to_ptr.vmem [resolvable:$true] %s45
      %51 = dma.hbm_to_vmem [thread:$0]  %s44, 1024, %s46, [#allocation5], 64, 64, 4
    $region17: #{tpu_custom_call.1} parent=1 // pred_fallthru
      _
    // Predicated region
    $region18: #{tpu_custom_call.1} parent=1 // pred_check
      _
    $region19: #{tpu_custom_call.1} parent=1 // pred_check_branch
      %53 = sbr.rel (0) target = $region21
    $region20: #{tpu_custom_call.1} parent=1 // pred_region
      _
    $region21: #{tpu_custom_call.1} parent=1 // pred_fallthru
      _
    // Predicated region
    $region22: #{tpu_custom_call.1} parent=1 // pred_check
      _
    $region23: #{tpu_custom_call.1} parent=1 // pred_check_branch
      %55 = sbr.rel (0) target = $region25
    $region24: #{tpu_custom_call.1} parent=1 // pred_region
      %57 = vsyncadd [#allocation8], 0
      %s58 = sshll.u32 %s5, 4
      %s59 = int_to_ptr.hbm [resolvable:$true] %s58
      %s60 = sshll.u32 [#allocation7], 4
      %s61 = int_to_ptr.vmem [resolvable:$true] %s60
      %66 = dma.hbm_to_vmem [thread:$0]  %s59, 1024, %s61, [#allocation8], 64, 64, 4
    $region25: #{tpu_custom_call.1} parent=1 // pred_fallthru
      _
    // Predicated region
    $region26: #{tpu_custom_call.1} parent=1 // pred_check
      _
    $region27: #{tpu_custom_call.1} parent=1 // pred_check_branch
      %68 = sbr.rel (0) target = $region29
    $region28: #{tpu_custom_call.1} parent=1 // pred_region
      _
    $region29: #{tpu_custom_call.1} parent=1 // pred_fallthru
      _
    // Predicated region
    $region30: #{tpu_custom_call.1} parent=1 // pred_check
      _
    $region31: #{tpu_custom_call.1} parent=1 // pred_check_branch
      %70 = sbr.rel (0) target = $region33
    $region32: #{tpu_custom_call.1} parent=1 // pred_region
      %72 = dma.done [#allocation3], 128
    $region33: #{tpu_custom_call.1} parent=1 // pred_fallthru
      _
    // Predicated region
    $region34: #{tpu_custom_call.1} parent=1 // pred_check
      _
    $region35: #{tpu_custom_call.1} parent=1 // pred_check_branch
      %74 = sbr.rel (0) target = $region37
    $region36: #{tpu_custom_call.1} parent=1 // pred_region
      %76 = dma.done [#allocation5], 64
    $region37: #{tpu_custom_call.1} parent=1 // pred_fallthru
      _
    // Predicated region
    $region38: #{tpu_custom_call.1} parent=1 // pred_check
      _
    $region39: #{tpu_custom_call.1} parent=1 // pred_check_branch
      %78 = sbr.rel (0) target = $region41
    $region40: #{tpu_custom_call.1} parent=1 // pred_region
      %80 = dma.done [#allocation5], 1024
    $region41: #{tpu_custom_call.1} parent=1 // pred_fallthru
      _
    // Predicated region
    $region42: #{tpu_custom_call.1} parent=1 // pred_check
      _
    $region43: #{tpu_custom_call.1} parent=1 // pred_check_branch
      %82 = sbr.rel (0) target = $region45
    $region44: #{tpu_custom_call.1} parent=1 // pred_region
      %84 = dma.done [#allocation8], 1024
    $region45: #{tpu_custom_call.1} parent=1 // pred_fallthru
      _
    %v86 = vld [vmem:[#allocation2] sm:$0xff]
    %v87 = vpack.c.bf16 %v86, %v86
    %v88 = vld [vmem:[#allocation4] sm:$0xf]
    %v89 = vld [vmem:[%s2] sm:$0x1]
    %v91 = vperm.slane %v89, 0
    %vm93 = vcmask 64512
    %v95 = vsel %vm93, %v87, 0
    %vm97 = vcmask 1043456
    %v99 = vsel %vm97, %v88, 0
    %101 = vmatpush.bf16.msra.mxu0 0
    %102 = vmatpush.bf16.msra.mxu0 0
    %103 = vmatpush.bf16.msra.mxu0 0
    %104 = vmatpush.bf16.msra.mxu0 0
    %105 = vmatpush.bf16.msra.mxu0 0
    %106 = vmatpush.bf16.msra.mxu0 0
    %107 = vmatpush.bf16.msra.mxu0 0
    %108 = vmatpush.bf16.msra.mxu0 %v99
    %109 = vmatmul.bf16.gmra.mxu0 %v95
    %v110 = vpop.f32.mrf.mxu0
    %v111 = vadd.f32 %v91, %v110
    %v112 = vpop.f32.mrf.mxu0
    %113 = vdwg.mxu0
    %v114 = vmax.f32 %v111, 0.0
    %v115 = vpack.c.bf16 %v114, %v114
    %v116 = vld [vmem:[#allocation6] sm:$0xf]
    %v117 = vld [vmem:[#allocation6 + $0x4] sm:$0xf]
    %v118 = vld [vmem:[#allocation6 + $0x8] sm:$0xf]
    %v119 = vld [vmem:[#allocation6 + $0xc] sm:$0xf]
    %v120 = vld [vmem:[#allocation6 + $0x10] sm:$0xf]
    %v121 = vld [vmem:[#allocation6 + $0x14] sm:$0xf]
    %v122 = vld [vmem:[#allocation6 + $0x18] sm:$0xf]
    %v123 = vld [vmem:[#allocation6 + $0x1c] sm:$0xf]
    %v124 = vld [vmem:[#allocation6 + $0x20] sm:$0xf]
    %v125 = vld [vmem:[#allocation6 + $0x24] sm:$0xf]
    %v126 = vld [vmem:[#allocation6 + $0x28] sm:$0xf]
    %v127 = vld [vmem:[#allocation6 + $0x2c] sm:$0xf]
    %v128 = vld [vmem:[#allocation6 + $0x30] sm:$0xf]
    %v129 = vld [vmem:[#allocation6 + $0x34] sm:$0xf]
    %v130 = vld [vmem:[#allocation6 + $0x38] sm:$0xf]
    %v131 = vld [vmem:[#allocation6 + $0x3c] sm:$0xf]
    %v132 = vld [vmem:[%s4] sm:$0x1]
    %v134 = vperm.slane %v132, 0
    %v152 = vunpack.c.l.b16 %v116
    %v153 = vunpack.c.l.b16 %v117
    %v154 = vunpack.c.l.b16 %v118
    %v155 = vunpack.c.l.b16 %v119
    %v156 = vunpack.c.l.b16 %v120
    %v157 = vunpack.c.l.b16 %v121
    %v158 = vunpack.c.l.b16 %v122
    %v159 = vunpack.c.l.b16 %v123
    %v160 = vunpack.c.l.b16 %v124
    %v161 = vunpack.c.l.b16 %v125
    %v162 = vunpack.c.l.b16 %v126
    %v163 = vunpack.c.l.b16 %v127
    %v164 = vunpack.c.l.b16 %v128
    %v165 = vunpack.c.l.b16 %v129
    %v166 = vunpack.c.l.b16 %v130
    %v167 = vunpack.c.l.b16 %v131
    %v168 = vpack.c.b16 %v153, %v152
    %v169 = vpack.c.b16 %v155, %v154
    %v170 = vpack.c.b16 %v157, %v156
    %v171 = vpack.c.b16 %v159, %v158
    %v172 = vpack.c.b16 %v161, %v160
    %v173 = vpack.c.b16 %v163, %v162
    %v174 = vpack.c.b16 %v165, %v164
    %v175 = vpack.c.b16 %v167, %v166
    %184 = vmatpush.bf16.msra.mxu0 %v175
    %185 = vmatpush.bf16.msra.mxu0 %v174
    %186 = vmatpush.bf16.msra.mxu0 %v173
    %187 = vmatpush.bf16.msra.mxu0 %v172
    %188 = vmatpush.bf16.msra.mxu0 %v171
    %189 = vmatpush.bf16.msra.mxu0 %v170
    %190 = vmatpush.bf16.msra.mxu0 %v169
    %191 = vmatpush.bf16.msra.mxu0 %v168
    %192 = vmatmul.bf16.gmra.mxu0 %v115
    %v193 = vpop.f32.mrf.mxu0
    %v194 = vadd.f32 %v134, %v193
    %v195 = vpop.f32.mrf.mxu0
    %196 = vdwg.mxu0
    %v197 = vmax.f32 %v194, 0.0
    %v198 = vpack.c.bf16 %v197, %v197
    %v199 = vld [vmem:[#allocation7] sm:$0xf]
    %v200 = vld [vmem:[#allocation7 + $0x4] sm:$0xf]
    %v201 = vld [vmem:[#allocation7 + $0x8] sm:$0xf]
    %v202 = vld [vmem:[#allocation7 + $0xc] sm:$0xf]
    %v203 = vld [vmem:[#allocation7 + $0x10] sm:$0xf]
    %v204 = vld [vmem:[#allocation7 + $0x14] sm:$0xf]
    %v205 = vld [vmem:[#allocation7 + $0x18] sm:$0xf]
    %v206 = vld [vmem:[#allocation7 + $0x1c] sm:$0xf]
    %v207 = vld [vmem:[#allocation7 + $0x20] sm:$0xf]
    %v208 = vld [vmem:[#allocation7 + $0x24] sm:$0xf]
    %v209 = vld [vmem:[#allocation7 + $0x28] sm:$0xf]
    %v210 = vld [vmem:[#allocation7 + $0x2c] sm:$0xf]
    %v211 = vld [vmem:[#allocation7 + $0x30] sm:$0xf]
    %v212 = vld [vmem:[#allocation7 + $0x34] sm:$0xf]
    %v213 = vld [vmem:[#allocation7 + $0x38] sm:$0xf]
    %v214 = vld [vmem:[#allocation7 + $0x3c] sm:$0xf]
    %v231 = vunpack.c.l.b16 %v199
    %v232 = vunpack.c.l.b16 %v200
    %v233 = vunpack.c.l.b16 %v201
    %v234 = vunpack.c.l.b16 %v202
    %v235 = vunpack.c.l.b16 %v203
    %v236 = vunpack.c.l.b16 %v204
    %v237 = vunpack.c.l.b16 %v205
    %v238 = vunpack.c.l.b16 %v206
    %v239 = vunpack.c.l.b16 %v207
    %v240 = vunpack.c.l.b16 %v208
    %v241 = vunpack.c.l.b16 %v209
    %v242 = vunpack.c.l.b16 %v210
    %v243 = vunpack.c.l.b16 %v211
    %v244 = vunpack.c.l.b16 %v212
    %v245 = vunpack.c.l.b16 %v213
    %v246 = vunpack.c.l.b16 %v214
    %v247 = vpack.c.b16 %v232, %v231
    %v248 = vpack.c.b16 %v234, %v233
    %v249 = vpack.c.b16 %v236, %v235
    %v250 = vpack.c.b16 %v238, %v237
    %v251 = vpack.c.b16 %v240, %v239
    %v252 = vpack.c.b16 %v242, %v241
    %v253 = vpack.c.b16 %v244, %v243
    %v254 = vpack.c.b16 %v246, %v245
    %263 = vmatpush.bf16.msra.mxu0 %v254
    %264 = vmatpush.bf16.msra.mxu0 %v253
    %265 = vmatpush.bf16.msra.mxu0 %v252
    %266 = vmatpush.bf16.msra.mxu0 %v251
    %267 = vmatpush.bf16.msra.mxu0 %v250
    %268 = vmatpush.bf16.msra.mxu0 %v249
    %269 = vmatpush.bf16.msra.mxu0 %v248
    %270 = vmatpush.bf16.msra.mxu0 %v247
    %271 = vmatmul.bf16.gmra.mxu0 %v198
    %v272 = vpop.f32.mrf.mxu0
    %v273 = vadd.f32 0.0, %v272
    %v274 = vpop.f32.mrf.mxu0
    %275 = vdwg.mxu0
    %v276 = vld [vmem:[%s6] sm:$0x1]
    %v278 = vperm.slane %v276, 0
    %v280 = vadd.f32 %v273, %v278
    %vm281 = vcmask 31744
    %282 = vst.msk [vmem:[%s7] sm:$0xff] %vm281, %v280
    // Predicated region
    $region46: #{tpu_custom_call.1} parent=1 // pred_check
      _
    $region47: #{tpu_custom_call.1} parent=1 // pred_check_branch
      %284 = sbr.rel (0) target = $region49
    $region48: #{tpu_custom_call.1} parent=1 // pred_region
      _
    $region49: #{tpu_custom_call.1} parent=1 // pred_fallthru
      _
    // Predicated region
    $region50: #{tpu_custom_call.1} parent=1 // pred_check
      _
    $region51: #{tpu_custom_call.1} parent=1 // pred_check_branch
      %286 = sbr.rel (0) target = $region53
    $region52: #{tpu_custom_call.1} parent=1 // pred_region
      _
    $region53: #{tpu_custom_call.1} parent=1 // pred_fallthru
      _
    %287 = vsyncpa [#allocation3], 1
    %288 = vsyncpa [#allocation5], 1
    %289 = vsyncpa [#allocation8], 1

</llo_original>
